<compile_context>
chip_gen: v7x
topology: tpu7x:2x2x1
jax: 0.10.0
libtpu: 0.0.40
codegen_flags: <defaults>
</compile_context>

<pallas_src>
import functools

import jax
import jax.numpy as jnp
from jax.experimental import pallas as pl
from jax.experimental.pallas import tpu as pltpu


def _round_up(a, b):
    return ((a + b - 1) // b) * b


def _ls_ce_kernel(preds_ref, out_ref, *, n_rows, row_tile):
    i = pl.program_id(0)

    x = preds_ref[...].astype(jnp.float32)                       # (TN, C)

    # logsumexp per row (max-shifted for stability)
    m = jnp.max(x, axis=-1, keepdims=True)                       # (TN, 1)
    sum_exp = jnp.sum(jnp.exp(x - m), axis=-1, keepdims=True)    # (TN, 1)
    logz = m + jnp.log(sum_exp)                                  # (TN, 1)

    # raw row sum of logits (used in wrapper:  -sum_c logp = C*logz - sum_c x)
    sum_x = jnp.sum(x, axis=-1, keepdims=True)                   # (TN, 1)

    # mask padded rows (global row index >= n_rows contributes 0)
    row = i * row_tile + jax.lax.broadcasted_iota(jnp.int32, (row_tile, 1), 0)
    valid = (row < n_rows).astype(jnp.float32)

    s_logz = jnp.sum(logz * valid)                               # scalar
    s_x = jnp.sum(sum_x * valid)                                 # scalar

    # lane-dense per-block partial-sum tile: [0,0]=sum(logz), [0,1]=sum(x)
    lane = jax.lax.broadcasted_iota(jnp.int32, out_ref.shape, 2)
    sub = jax.lax.broadcasted_iota(jnp.int32, out_ref.shape, 1)
    out_ref[...] = jnp.where((sub == 0) & (lane == 0), s_logz,
                             jnp.where((sub == 0) & (lane == 1), s_x, 0.0))


def label_smoothing_cross_entropy(preds, target, *, epsilon=0.05, reduction='mean'):
    """preds: (N, C) float (f32 or bf16), target: (N,) int. Returns scalar f32."""
    n_rows, n_classes = preds.shape
    itemsize = jnp.dtype(preds.dtype).itemsize
    sublane = 8 if itemsize >= 4 else (16 if itemsize == 2 else 32)

    # Target gather happens in the wrapper: touches only N elements, keeps the
    # kernel a pure streaming reduction over preds.
    target_i32 = target.astype(jnp.int32)
    x_t = jnp.take_along_axis(
        preds.astype(jnp.float32), target_i32[:, None], axis=-1)[:, 0]   # (N,)
    s_xt = jnp.sum(x_t)

    # Per-chip VMEM budget (v5e/v6e: 128 MiB physical; v7x: 64 MiB per TC).
    try:
        vmem_capacity = int(pltpu.get_tpu_info().vmem_capacity_bytes)
    except Exception:  # pragma: no cover - conservative fallback
        vmem_capacity = 64 * 1024 * 1024
    # ~0.75 * capacity, capped at 96 MiB (v5e/v6e) -> 48 MiB on v7x.
    vmem_limit = int(min(max(3 * vmem_capacity // 4, 16 * 1024 * 1024),
                         96 * 1024 * 1024))

    # Per-step VMEM: 2x double-buffered preds blocks (input dtype) plus up to
    # two f32-sized intermediates (upcast + exp) inside the kernel; reserve a
    # little for the tiny (8,128) output blocks and misc.
    reserve = 2 * 1024 * 1024
    per_row_cost = 2 * n_classes * itemsize + 2 * n_classes * 4
    max_rows = max((vmem_limit - reserve) // max(per_row_cost, 1), sublane)
    row_tile = max((int(max_rows) // sublane) * sublane, sublane)

    n_pad_min = _round_up(n_rows, sublane)
    row_tile = min(row_tile, n_pad_min)
    if n_pad_min >= 2 * sublane:
        # Keep >= 2 row blocks so the parallel grid axis can span both v7x TCs.
        half = _round_up(pl.cdiv(n_pad_min, 2), sublane)
        row_tile = min(row_tile, half)

    n_pad = _round_up(n_rows, row_tile)
    if n_pad != n_rows:
        preds = jnp.pad(preds, ((0, n_pad - n_rows), (0, 0)))
    num_blocks = n_pad // row_tile

    kernel = functools.partial(_ls_ce_kernel, n_rows=n_rows, row_tile=row_tile)

    cost = pl.CostEstimate(
        flops=5 * n_rows * n_classes,
        transcendentals=n_rows * n_classes,
        bytes_accessed=n_pad * n_classes * itemsize + num_blocks * 8 * 128 * 4,
    )

    partials = pl.pallas_call(
        kernel,
        out_shape=jax.ShapeDtypeStruct((num_blocks, 8, 128), jnp.float32),
        grid_spec=pltpu.PrefetchScalarGridSpec(
            num_scalar_prefetch=0,
            grid=(num_blocks,),
            in_specs=[
                pl.BlockSpec((row_tile, n_classes), lambda i: (i, 0)),
            ],
            out_specs=pl.BlockSpec((1, 8, 128), lambda i: (i, 0, 0)),
        ),
        compiler_params=pltpu.CompilerParams(
            dimension_semantics=("parallel",),
            vmem_limit_bytes=vmem_limit),
        cost_estimate=cost,
    )(preds)

    s_logz = jnp.sum(partials[:, 0, 0])    # sum_i logsumexp_i      (valid rows)
    s_x = jnp.sum(partials[:, 0, 1])       # sum_i sum_c x_ic       (valid rows)

    # -sum_c logp[i,c] = C*logz_i - sum_c x_ic ;  -logp[i,t_i] = logz_i - x[i,t_i]
    loss_sum = jnp.float32(n_classes) * s_logz - s_x
    nll_sum = s_logz - s_xt

    if reduction == 'mean':
        loss = loss_sum / jnp.float32(n_rows)
        nll = nll_sum / jnp.float32(n_rows)
    elif reduction == 'sum':
        loss = loss_sum
        nll = nll_sum
    else:
        # TODO(synk): reduction='none' needs a per-row output; only 'mean'/'sum' supported.
        raise NotImplementedError("reduction='none' not implemented")

    return (jnp.float32(epsilon) * (loss / jnp.float32(n_classes))
            + jnp.float32(1.0 - epsilon) * nll)


def _reference(preds, target, epsilon=0.05):
    logp = jax.nn.log_softmax(preds.astype(jnp.float32), axis=-1)
    n = preds.shape[-1]
    loss = jnp.mean(-jnp.sum(logp, axis=-1))
    nll = jnp.mean(-logp[jnp.arange(preds.shape[0]), target])
    return epsilon * (loss / n) + (1.0 - epsilon) * nll


if __name__ == "__main__":
    key = jax.random.PRNGKey(0)
    k1, k2 = jax.random.split(key)
    N, C = 16, 32                      # small synthetic shapes: batch=16, classes=32
    preds = jax.random.normal(k1, (N, C), dtype=jnp.float32)
    target = jax.random.randint(k2, (N,), 0, C, dtype=jnp.int32)

    out = label_smoothing_cross_entropy(preds, target, epsilon=0.05)
    out = jax.block_until_ready(out)

    ref = _reference(preds, target, epsilon=0.05)
    assert jnp.allclose(out, ref, atol=1e-5, rtol=1e-5), (out, ref)
    print("KERNEL_OK")
</pallas_src>

<mosaic_0001>
module attributes {stable_mosaic.version = 11 : i64} {
  func.func @_ls_ce_kernel(%arg0: i32, %arg1: memref<8x32xf32, #tpu.memory_space<vmem>>, %arg2: memref<1x8x128xf32, #tpu.memory_space<vmem>>) attributes {dimension_semantics = [#tpu.dimension_semantics<parallel>], iteration_bounds = array<i64: 2>, scalar_prefetch = 0 : i64, scratch_operands = 0 : i64, tpu.core_type = #tpu.core_type<tc>, window_params = [{transform_indices = @transform_0, window_bounds = array<i64: 8, 32>}, {transform_indices = @transform_1, window_bounds = array<i64: 1, 8, 128>}]} {
    %c0 = arith.constant 0 : index
    %c0_0 = arith.constant 0 : index
    %0 = vector.load %arg1[%c0, %c0_0] : memref<8x32xf32, #tpu.memory_space<vmem>>, vector<8x32xf32>
    %cst = arith.constant dense<0xFF800000> : vector<8xf32>
    %1 = vector.multi_reduction <maximumf>, %0, %cst [1] : vector<8x32xf32> to vector<8xf32>
    %2 = vector.shape_cast %1 : vector<8xf32> to vector<8x1xf32>
    %3 = vector.broadcast %2 : vector<8x1xf32> to vector<8x32xf32>
    %4 = arith.subf %0, %3 : vector<8x32xf32>
    %5 = math.exp %4 : vector<8x32xf32>
    %cst_1 = arith.constant dense<0.000000e+00> : vector<8xf32>
    %6 = vector.multi_reduction <add>, %5, %cst_1 [1] : vector<8x32xf32> to vector<8xf32>
    %7 = vector.shape_cast %6 : vector<8xf32> to vector<8x1xf32>
    %8 = math.log %7 : vector<8x1xf32>
    %9 = arith.addf %2, %8 : vector<8x1xf32>
    %cst_2 = arith.constant dense<0.000000e+00> : vector<8xf32>
    %10 = vector.multi_reduction <add>, %0, %cst_2 [1] : vector<8x32xf32> to vector<8xf32>
    %11 = vector.shape_cast %10 : vector<8xf32> to vector<8x1xf32>
    %c8_i32 = arith.constant 8 : i32
    %12 = arith.muli %arg0, %c8_i32 : i32
    %13 = tpu.iota {dimensions = array<i32: 0>} : vector<8x1xi32>
    %14 = vector.broadcast %12 : i32 to vector<8x1xi32>
    %15 = arith.addi %14, %13 : vector<8x1xi32>
    %c16_i32 = arith.constant 16 : i32
    %16 = vector.broadcast %c16_i32 : i32 to vector<8x1xi32>
    %17 = arith.cmpi slt, %15, %16 : vector<8x1xi32>
    %18 = arith.extui %17 : vector<8x1xi1> to vector<8x1xi32>
    %19 = arith.sitofp %18 : vector<8x1xi32> to vector<8x1xf32>
    %20 = arith.mulf %9, %19 : vector<8x1xf32>
    %21 = vector.shape_cast %20 : vector<8x1xf32> to vector<1x8x1xf32>
    %cst_3 = arith.constant dense<0.000000e+00> : vector<1xf32>
    %22 = vector.multi_reduction <add>, %21, %cst_3 [1, 2] : vector<1x8x1xf32> to vector<1xf32>
    %23 = vector.shape_cast %22 : vector<1xf32> to vector<1x1x1xf32>
    %24 = vector.extract %23[0, 0, 0] : f32 from vector<1x1x1xf32>
    %25 = arith.mulf %11, %19 : vector<8x1xf32>
    %26 = vector.shape_cast %25 : vector<8x1xf32> to vector<1x8x1xf32>
    %cst_4 = arith.constant dense<0.000000e+00> : vector<1xf32>
    %27 = vector.multi_reduction <add>, %26, %cst_4 [1, 2] : vector<1x8x1xf32> to vector<1xf32>
    %28 = vector.shape_cast %27 : vector<1xf32> to vector<1x1x1xf32>
    %29 = vector.extract %28[0, 0, 0] : f32 from vector<1x1x1xf32>
    %30 = tpu.iota {dimensions = array<i32: 2>} : vector<1x8x128xi32>
    %31 = tpu.iota {dimensions = array<i32: 1>} : vector<1x8x128xi32>
    %c0_i32 = arith.constant 0 : i32
    %32 = vector.broadcast %c0_i32 : i32 to vector<1x8x128xi32>
    %33 = arith.cmpi eq, %31, %32 : vector<1x8x128xi32>
    %c0_i32_5 = arith.constant 0 : i32
    %34 = vector.broadcast %c0_i32_5 : i32 to vector<1x8x128xi32>
    %35 = arith.cmpi eq, %30, %34 : vector<1x8x128xi32>
    %36 = arith.andi %33, %35 : vector<1x8x128xi1>
    %c0_i32_6 = arith.constant 0 : i32
    %37 = vector.broadcast %c0_i32_6 : i32 to vector<1x8x128xi32>
    %38 = arith.cmpi eq, %31, %37 : vector<1x8x128xi32>
    %c1_i32 = arith.constant 1 : i32
    %39 = vector.broadcast %c1_i32 : i32 to vector<1x8x128xi32>
    %40 = arith.cmpi eq, %30, %39 : vector<1x8x128xi32>
    %41 = arith.andi %38, %40 : vector<1x8x128xi1>
    %cst_7 = arith.constant 0.000000e+00 : f32
    %42 = vector.broadcast %29 : f32 to vector<1x8x128xf32>
    %43 = vector.broadcast %cst_7 : f32 to vector<1x8x128xf32>
    %44 = arith.select %41, %42, %43 : vector<1x8x128xi1>, vector<1x8x128xf32>
    %45 = vector.broadcast %24 : f32 to vector<1x8x128xf32>
    %46 = arith.select %36, %45, %44 : vector<1x8x128xi1>, vector<1x8x128xf32>
    %c0_8 = arith.constant 0 : index
    %c0_9 = arith.constant 0 : index
    %c0_10 = arith.constant 0 : index
    %47 = vector.load %arg2[%c0_8, %c0_9, %c0_10] : memref<1x8x128xf32, #tpu.memory_space<vmem>>, vector<1x8x128xf32>
    tpu.vector_store %arg2[%c0_8, %c0_9, %c0_10], %46 {strides = array<i32>} : memref<1x8x128xf32, #tpu.memory_space<vmem>>, vector<1x8x128xf32>,
    return
  }
  func.func @transform_0(%arg0: i32) -> (i32, i32) {
    %c0_i32 = arith.constant 0 : i32
    %c0_i32_0 = arith.constant 0 : i32
    return %arg0, %c0_i32 : i32, i32
  }
  func.func @transform_1(%arg0: i32) -> (i32, i32, i32) {
    %c0_i32 = arith.constant 0 : i32
    %c0_i32_0 = arith.constant 0 : i32
    %c0_i32_1 = arith.constant 0 : i32
    return %arg0, %c0_i32, %c0_i32_0 : i32, i32, i32
  }
}

</mosaic_0001>

<llo_original>
// kernel: tpu_custom_call.1
$region0: #{tpu_custom_call.1}
  #allocation0 [shape = 'u32[]', space=smem, size = 0x4, offset = 0x4, fixed_abs, tag = 'smem constant byte address 0x4 - core index']
  #allocation1 [shape = 'u32[144,128]{1,0:T(1,128)}', space=vmem, size = 0x12000, scoped, tag = 'internal scratch']
  %s0 = inlined_call_operand.hbm [shape: f32[16,32], index: 0, kind: input, shape index: {}]
  %s1 = inlined_call_operand.hbm [shape: f32[2,8,128], index: 1, kind: output, shape index: {}]
  %s2 = sld [smem:[#allocation0]]
  $region41: #{tpu_custom_call.1} parent=0
    _
  %s4 = ssub.s32 1, %s2
  %s5 = scalar_select 0, %s4, %s2
  $region1: #{tpu_custom_call.1} parent=0
    #allocation2 [shape = 'u8[8192]{0}', space=vmem, size = 0x2000, scoped, tag = 'input window, operand 0']
    #allocation3 [shape = 's32[2]{0}', space=sflag, size = 0x8, scoped, tag = 'scoped memory for tpu_custom_call.1']
    #allocation4 [shape = 's32[2]{0}', space=sflag, size = 0x8, scoped, tag = 'scoped memory for tpu_custom_call.1']
    #allocation5 [shape = 'u8[8192]{0}', space=vmem, size = 0x2000, scoped, tag = 'output window, operand 0']
    %6 = vsyncpa [#allocation3], 0
    %s7 = scalar_lea.sflag [#allocation3], 1
    %8 = vsyncpa %s7, 0
    %9 = vsyncpa [#allocation4], 0
    %s10 = scalar_lea.sflag [#allocation4], 1
    %11 = vsyncpa %s10, 0
    loop: start=0, step=1, limit=4
    $region2: #{tpu_custom_call.1} parent=1 // loop_pre_header
      _
    $region3: #{tpu_custom_call.1} parent=1 // loop_header
      %s13 = sphi 0, %s17
      %p14 = scmp.ge.s32.totalorder %s13, 4
      %s23 = sphi 0, %s25
      %s26 = sphi 0, %s23
      %s27 = sphi 0, %s26
      %s43 = sphi 0, %s27
      %s49 = sphi 0, %s51
      %s52 = sphi 0, %s49
      %s53 = sphi 0, %s52
      %s69 = sphi 0, %s53
    $region4: #{tpu_custom_call.1} parent=1 // loop_header_branch
      %16 = sbr.rel (%p14) target = $region8
    $region5: #{tpu_custom_call.1} parent=1 // loop_body
      %s18 = ssub.s32 %s13, 1
      %s19 = ssub.s32 %s13, 2
      %s20 = sadd.s32 %s13, 1
      %s21 = ssub.s32 %s13, %s20
      %p22 = scmp.eq.s32.totalorder %s21, 0
      %s24 = sadd.s32 %s23, 1
      %s25 = scalar_select %p22, %s23, %s24
      %p28 = pneg %p22
      %p29 = scmp.eq.s32.totalorder %s13, 1
      %p30 = por %p28, %p29
      %p31 = scmp.ne.s32.totalorder %s23, %s26
      %p32 = scmp.eq.s32.totalorder %s13, 0
      %p33 = por %p31, %p32
      %p34 = scmp.ne.s32.totalorder %s23, %s26
      %p35 = scmp.eq.s32.totalorder %s18, 1
      %p36 = por %p34, %p35
      %p37 = scmp.ne.s32.totalorder %s26, %s27
      %p38 = scmp.eq.s32.totalorder %s18, 0
      %p39 = por %p37, %p38
      %p40 = scmp.ne.s32.totalorder %s26, %s27
      %p41 = scmp.eq.s32.totalorder %s19, 1
      %p42 = por %p40, %p41
      %p44 = scmp.ne.s32.totalorder %s27, %s43
      %p45 = scmp.eq.s32.totalorder %s19, 0
      %p46 = por %p44, %p45
      %s47 = ssub.s32 %s13, %s20
      %p48 = scmp.eq.s32.totalorder %s47, 0
      %s50 = sadd.s32 %s49, 1
      %s51 = scalar_select %p48, %s49, %s50
      %p54 = pneg %p48
      %p55 = scmp.eq.s32.totalorder %s13, 1
      %p56 = por %p54, %p55
      %p57 = scmp.ne.s32.totalorder %s49, %s52
      %p58 = scmp.eq.s32.totalorder %s13, 0
      %p59 = por %p57, %p58
      %p60 = scmp.ne.s32.totalorder %s49, %s52
      %p61 = scmp.eq.s32.totalorder %s18, 1
      %p62 = por %p60, %p61
      %p63 = scmp.ne.s32.totalorder %s52, %s53
      %p64 = scmp.eq.s32.totalorder %s18, 0
      %p65 = por %p63, %p64
      %p66 = scmp.ne.s32.totalorder %s52, %s53
      %p67 = scmp.eq.s32.totalorder %s19, 1
      %p68 = por %p66, %p67
      %p70 = scmp.ne.s32.totalorder %s53, %s69
      %p71 = scmp.eq.s32.totalorder %s19, 0
      %p72 = por %p70, %p71
      %p73 = scmp.le.s32.totalorder 1, %s13
      %p74 = scmp.lt.s32.totalorder %s13, 3
      %p75 = pnand %p73, %p74
      %p76 = pneg %p75
      // Predicated region
      $region9: #{tpu_custom_call.1} parent=5 // pred_check
        _
      $region10: #{tpu_custom_call.1} parent=5 // pred_check_branch
        %78 = sbr.rel (%p75) target = $region12
      $region11: #{tpu_custom_call.1} parent=5 // pred_region
        %s79 = ssub.s32 %s13, 1
      $region12: #{tpu_custom_call.1} parent=5 // pred_fallthru
        _
      %p80 = scmp.lt.s32.totalorder %s13, 2
      // Predicated region
      $region13: #{tpu_custom_call.1} parent=5 // pred_check
        %p81 = pneg %p80
      $region14: #{tpu_custom_call.1} parent=5 // pred_check_branch
        %83 = sbr.rel (%p81) target = $region16
      $region15: #{tpu_custom_call.1} parent=5 // pred_region
        // Predicated region
        $region17: #{tpu_custom_call.1} parent=15 // pred_check
          %p84 = pneg %p33
        $region18: #{tpu_custom_call.1} parent=15 // pred_check_branch
          %86 = sbr.rel (%p84) target = $region20
        $region19: #{tpu_custom_call.1} parent=15 // pred_region
          %s87 = sand.u32 %s23, 1
          %s88 = scalar_lea.sflag [#allocation3], %s87
          %s89 = sand.u32 %s23, 1
          %s90 = smul.addr %s89, 8
          %s91 = scalar_lea.vmem [#allocation2], %s90
          %s93 = ssub.s32 128, 128
          %94 = vsyncadd %s88, %s93
          %s95 = smul.addr %s13, 128
          %s96 = scalar_lea.hbm %s0, %s95
          %s98 = sshll.u32 %s91, 4
          %s99 = int_to_ptr.vmem [resolvable:$true] %s98
          %101 = dma.hbm_to_vmem [thread:$0]  %s96, 128, %s99, %s88
        $region20: #{tpu_custom_call.1} parent=15 // pred_fallthru
          _
      $region16: #{tpu_custom_call.1} parent=5 // pred_fallthru
        _
      %p102 = scmp.le.s32.totalorder 1, %s13
      %p103 = scmp.lt.s32.totalorder %s13, 3
      %p104 = pnand %p102, %p103
      %p105 = pneg %p104
      // Predicated region
      $region21: #{tpu_custom_call.1} parent=5 // pred_check
        _
      $region22: #{tpu_custom_call.1} parent=5 // pred_check_branch
        %107 = sbr.rel (%p104) target = $region24
      $region23: #{tpu_custom_call.1} parent=5 // pred_region
        %s108 = ssub.s32 %s13, 1
        %s109 = sand.u32 %s26, 1
        %s110 = scalar_lea.sflag [#allocation3], %s109
        %s111 = sand.u32 %s26, 1
        %s112 = smul.addr %s111, 8
        %s113 = scalar_lea.vmem [#allocation2], %s112
        // Predicated region
        $region25: #{tpu_custom_call.1} parent=23 // pred_check
          %p114 = pneg %p39
        $region26: #{tpu_custom_call.1} parent=23 // pred_check_branch
          %116 = sbr.rel (%p114) target = $region28
        $region27: #{tpu_custom_call.1} parent=23 // pred_region
          %117 = dma.done %s110, 128
        $region28: #{tpu_custom_call.1} parent=23 // pred_fallthru
          _
        %s118 = sand.u32 %s26, 1
        %s119 = scalar_lea.sflag [#allocation3], %s118
        %s120 = sand.u32 %s26, 1
        %s121 = smul.addr %s120, 8
        %s122 = scalar_lea.vmem [#allocation2], %s121
        %p123 = pneg %p39
        %p124 = pneg %p36
        %p125 = pneg %p65
        %p126 = pneg %p62
        %s127 = sand.u32 %s52, 1
        %s128 = scalar_lea.sflag [#allocation4], %s127
        %s129 = sand.u32 %s52, 1
        %s130 = smul.addr %s129, 8
        %s131 = scalar_lea.vmem [#allocation5], %s130
        %v132 = vld [vmem:[%s113] sm:$0xff]
        %vm133 = vcmask 261120
        %v134 = vsel %vm133, %v132, -inf
        %135 = vmax.xlane.f32.xlu0 %v134
        %v136 = vpop.xlane.xlu0 %135
        %v137 = vsub.f32 %v132, %v136
        %v138 = vmul.f32 %v137, 1.442695
        %v139 = vpow.pop %v138
        %v140 = vsel %vm133, %v139, 0.0
        %141 = vadd.xlane.f32.xlu0 %v140
        %v142 = vpop.xlane.xlu0 %141
        %v143 = vlog2.pop %v142
        %v144 = vmul.f32 %v143, 0.6931472
        %v145 = vadd.f32 %v136, %v144
        %v146 = vsel %vm133, %v132, 0.0
        %147 = vadd.xlane.f32.xlu0 %v146
        %v148 = vpop.xlane.xlu0 %147
        %s149 = smul.u32 %s18, 8
        %v150 = vlaneseq
        %v151 = vshrl.u32 %v150, 7
        %v152 = vstv %s149
        %v153 = vadd.s32 %v152, %v151
        %vm154 = vcmp.lt.s32.totalorder %v153, 16
        %v155 = vsel %vm154, 1, 0
        %v156 = vcvt.s32.f32 %v155
        %v157 = vmul.f32 %v145, %v156
        %vm158 = vcmask 7168
        %v159 = vsel %vm158, %v157, 0.0
        %160 = vadd.xlane.f32.xlu0 %v159
        %v161 = vpop.xlane.xlu0 %160
        %v162 = vrot.slane %v161, 4
        %v163 = vadd.f32 %v161, %v162
        %v164 = vrot.slane %v163, 2
        %v165 = vadd.f32 %v163, %v164
        %v166 = vrot.slane %v165, 1
        %v167 = vadd.f32 %v165, %v166
        %s168 = vtos %v167
        %v169 = vmul.f32 %v148, %v156
        %v170 = vsel %vm158, %v169, 0.0
        %171 = vadd.xlane.f32.xlu0 %v170
        %v172 = vpop.xlane.xlu0 %171
        %v173 = vrot.slane %v172, 4
        %v174 = vadd.f32 %v172, %v173
        %v175 = vrot.slane %v174, 2
        %v176 = vadd.f32 %v174, %v175
        %v177 = vrot.slane %v176, 1
        %v178 = vadd.f32 %v176, %v177
        %s179 = vtos %v178
        %v180 = vlaneseq
        %v181 = vand.u32 %v180, 127
        %vm182 = vcmp.eq.s32.totalorder %v151, 0
        %vm183 = vcmp.eq.s32.totalorder %v181, 0
        %vm184 = vmand %vm182, %vm183
        %vm185 = vcmp.eq.s32.totalorder %v181, 1
        %vm186 = vmand %vm182, %vm185
        %v187 = vstv %s179
        %v188 = vsel %vm186, %v187, 0.0
        %v189 = vstv %s168
        %v190 = vsel %vm184, %v189, %v188
        %191 = vst [vmem:[%s131] sm:$0xff] %v190
        %s192 = sand.u32 %s52, 1
        %s193 = scalar_lea.sflag [#allocation4], %s192
        %s194 = sand.u32 %s52, 1
        %s195 = smul.addr %s194, 8
        %s196 = scalar_lea.vmem [#allocation5], %s195
        // Predicated region
        $region29: #{tpu_custom_call.1} parent=23 // pred_check
          %p197 = pneg %p62
        $region30: #{tpu_custom_call.1} parent=23 // pred_check_branch
          %199 = sbr.rel (%p197) target = $region32
        $region31: #{tpu_custom_call.1} parent=23 // pred_region
          %s201 = ssub.s32 128, 128
          %202 = vsyncadd %s193, %s201
          %s203 = smul.addr %s18, 128
          %s204 = scalar_lea.hbm %s1, %s203
          %s206 = sshll.u32 %s196, 4
          %s207 = int_to_ptr.vmem [resolvable:$true] %s206
          %209 = dma.vmem_to_hbm [thread:$0]  %s207, 128, %s204, %s193
        $region32: #{tpu_custom_call.1} parent=23 // pred_fallthru
          _
      $region24: #{tpu_custom_call.1} parent=5 // pred_fallthru
        _
      %p210 = scmp.le.s32.totalorder 2, %s13
      // Predicated region
      $region33: #{tpu_custom_call.1} parent=5 // pred_check
        %p211 = pneg %p210
      $region34: #{tpu_custom_call.1} parent=5 // pred_check_branch
        %213 = sbr.rel (%p211) target = $region36
      $region35: #{tpu_custom_call.1} parent=5 // pred_region
        %s214 = ssub.s32 %s13, 2
        // Predicated region
        $region37: #{tpu_custom_call.1} parent=35 // pred_check
          %p215 = pneg %p68
        $region38: #{tpu_custom_call.1} parent=35 // pred_check_branch
          %217 = sbr.rel (%p215) target = $region40
        $region39: #{tpu_custom_call.1} parent=35 // pred_region
          %s218 = sand.u32 %s53, 1
          %s219 = scalar_lea.sflag [#allocation4], %s218
          %s220 = sand.u32 %s53, 1
          %s221 = smul.addr %s220, 8
          %s222 = scalar_lea.vmem [#allocation5], %s221
          %223 = dma.done %s219, 128
        $region40: #{tpu_custom_call.1} parent=35 // pred_fallthru
          _
      $region36: #{tpu_custom_call.1} parent=5 // pred_fallthru
        _
    $region6: #{tpu_custom_call.1} parent=1 // loop_footer
      %s17 = sadd.s32 1, %s13
    $region7: #{tpu_custom_call.1} parent=1 // loop_footer_branch
      %12 = sbr.rel target = $region3
    $region8: #{tpu_custom_call.1} parent=1 // loop_exit
      _
    %224 = vsyncpa [#allocation3], 1
    %s225 = scalar_lea.sflag [#allocation3], 1
    %226 = vsyncpa %s225, 1
    %227 = vsyncpa [#allocation4], 1
    %s228 = scalar_lea.sflag [#allocation4], 1
    %229 = vsyncpa %s228, 1

</llo_original>
